<compile_context>
chip_gen: v6e
topology: v6e:2x2x1
jax: 0.10.0
libtpu: 0.0.40
codegen_flags: <defaults>
</compile_context>

<pallas_src>
import functools

import jax
import jax.numpy as jnp
from jax.experimental import pallas as pl
from jax.experimental.pallas import tpu as pltpu


def block_kernel(xt_ref, w1_ref, b1_ref, w2_ref, b2_ref, ot_ref):
    # xt_ref: (in_N, TB)  f32   batch tile on the lane axis (TB % 128 == 0)
    # w1_ref: (width, in_N)     bf16 (or f32), VMEM-resident across grid steps
    # b1_ref: (width, 1)  f32
    # w2_ref: (out_N, width)    bf16 (or f32), VMEM-resident across grid steps
    # b2_ref: (out_N, 1)  f32
    # ot_ref: (out_N, TB) f32   lane-dense output tile (aliased onto x^T)
    xt = xt_ref[...]                                   # f32 copy kept for the residual
    x_mx = xt.astype(w1_ref.dtype)                     # bf16 MXU input (no-op if f32)
    h = jnp.dot(w1_ref[...], x_mx, preferred_element_type=jnp.float32)
    h = jnp.tanh(h + b1_ref[...])                      # f32 bias add + tanh (EUP slot)
    y = jnp.dot(w2_ref[...], h.astype(w2_ref.dtype), preferred_element_type=jnp.float32)
    y = jnp.tanh(y + b2_ref[...])
    # TODO(synk): if the EUP (tanh) slot ever shows as binding in the bundle dump,
    # trade into the 4 VALU slots with a rational tanh approximation.
    ot_ref[...] = (y + xt).astype(ot_ref.dtype)        # residual in f32; lane-dense store


def _pick_batch_tile(B, max_tile=2048):
    """Lane-dense batch tile: multiple of 128, as large as practical, but keep
    >= 2 grid steps whenever possible so v7x's 2 TensorCores both get work."""
    assert B % 128 == 0, "batch must be a multiple of 128 for lane-dense tiling"
    if B == 128:
        return 128
    tb = min(max_tile, B // 2)
    tb = (tb // 128) * 128
    while B % tb:
        tb -= 128
    return max(tb, 128)


@functools.partial(jax.jit, static_argnames=("tb", "use_bf16_mxu"))
def drm_block(x, w1, b1, w2, b2, *, tb=None, use_bf16_mxu=True):
    """x: (B, in_N); w1: (width, in_N); b1: (width,); w2: (out_N, width); b2: (out_N,).

    Weights/biases follow PyTorch nn.Linear's (out_features, in_features) layout.
    """
    B, in_N = x.shape
    width = w1.shape[0]
    out_N = w2.shape[0]
    assert w1.shape == (width, in_N) and w2.shape == (out_N, width)
    assert in_N == out_N, "residual requires in_N == out_N"

    if tb is None:
        tb = _pick_batch_tile(B)
    assert B % tb == 0 and tb % 128 == 0

    # Feature-major layout: batch lands on the lane axis -> lane-dense datapath.
    x_t = x.T                                              # (in_N, B), f32
    mx_dtype = jnp.bfloat16 if use_bf16_mxu else x.dtype
    w1c = w1.astype(mx_dtype)
    w2c = w2.astype(mx_dtype)
    b1c = b1.reshape(width, 1).astype(jnp.float32)
    b2c = b2.reshape(out_N, 1).astype(jnp.float32)

    grid = (B // tb,)
    out_t = pl.pallas_call(
        block_kernel,
        out_shape=jax.ShapeDtypeStruct((out_N, B), x.dtype),
        grid=grid,
        in_specs=[
            pl.BlockSpec((in_N, tb), lambda i: (0, i)),      # x^T tile (lane-dense)
            pl.BlockSpec((width, in_N), lambda i: (0, 0)),   # W1: constant map -> resident
            pl.BlockSpec((width, 1), lambda i: (0, 0)),      # b1
            pl.BlockSpec((out_N, width), lambda i: (0, 0)),  # W2: constant map -> resident
            pl.BlockSpec((out_N, 1), lambda i: (0, 0)),      # b2
        ],
        out_specs=pl.BlockSpec((out_N, tb), lambda i: (0, i)),
        # x^T and the output have identical shape/dtype; each input tile is fully
        # consumed before its store, so write the result in place (saves HBM).
        input_output_aliases={0: 0},
        compiler_params=pltpu.CompilerParams(
            dimension_semantics=("parallel",),
            # Pre-budget VMEM: headroom if the layer scales, while staying below
            # v7x's 64 MiB physical VMEM (v5e/v6e have 128 MiB).
            vmem_limit_bytes=48 * 1024 * 1024,
        ),
    )(x_t, w1c, b1c, w2c, b2c)
    return out_t.T                                         # back to (B, out_N)


def reference_block(x, w1, b1, w2, b2):
    h = jnp.tanh(x @ w1.T + b1)
    y = jnp.tanh(h @ w2.T + b2)
    return y + x


if __name__ == "__main__":
    # Block(in_N=32, width=64, out_N=32); residual needs in_N == out_N.
    B, in_N, width, out_N = 256, 32, 64, 32

    key = jax.random.PRNGKey(0)
    kx, kw1, kb1, kw2, kb2 = jax.random.split(key, 5)

    x = jax.random.normal(kx, (B, in_N), dtype=jnp.float32)
    # Deterministic init mimicking nn.Linear's uniform(-1/sqrt(fan_in), 1/sqrt(fan_in)),
    # in PyTorch's (out_features, in_features) weight layout.
    lim1 = 1.0 / jnp.sqrt(jnp.float32(in_N))
    lim2 = 1.0 / jnp.sqrt(jnp.float32(width))
    w1 = jax.random.uniform(kw1, (width, in_N), jnp.float32, -lim1, lim1)
    b1 = jax.random.uniform(kb1, (width,), jnp.float32, -lim1, lim1)
    w2 = jax.random.uniform(kw2, (out_N, width), jnp.float32, -lim2, lim2)
    b2 = jax.random.uniform(kb2, (out_N,), jnp.float32, -lim2, lim2)

    ref = reference_block(x, w1, b1, w2, b2)

    # Exact-precision path (f32 MXU): tight correctness check of the kernel structure.
    out_f32 = jax.block_until_ready(drm_block(x, w1, b1, w2, b2, use_bf16_mxu=False))
    assert out_f32.shape == (B, out_N)
    assert jnp.allclose(out_f32, ref, atol=1e-5, rtol=1e-5), "f32 path mismatch vs reference"

    # Performance path (bf16 MXU inputs; f32 accumulate / bias / tanh / residual).
    out = jax.block_until_ready(drm_block(x, w1, b1, w2, b2))
    assert out.shape == (B, out_N)
    assert jnp.allclose(out, ref, atol=3e-2, rtol=3e-2), "bf16-MXU path mismatch vs reference"

    print("KERNEL_OK")
</pallas_src>

<mosaic_0001>
module attributes {stable_mosaic.version = 11 : i64} {
  func.func @block_kernel(%arg0: i32, %arg1: memref<32x128xf32, #tpu.memory_space<vmem>>, %arg2: memref<64x32xf32, #tpu.memory_space<vmem>>, %arg3: memref<64x1xf32, #tpu.memory_space<vmem>>, %arg4: memref<32x64xf32, #tpu.memory_space<vmem>>, %arg5: memref<32x1xf32, #tpu.memory_space<vmem>>, %arg6: memref<32x128xf32, #tpu.memory_space<vmem>>) attributes {dimension_semantics = [#tpu.dimension_semantics<parallel>], iteration_bounds = array<i64: 2>, scalar_prefetch = 0 : i64, scratch_operands = 0 : i64, tpu.core_type = #tpu.core_type<tc>, window_params = [{transform_indices = @transform_0, window_bounds = array<i64: 32, 128>}, {pipeline_mode = #tpu.pipeline_mode<synchronous>, transform_indices = @transform_1, window_bounds = array<i64: 64, 32>}, {pipeline_mode = #tpu.pipeline_mode<synchronous>, transform_indices = @transform_2, window_bounds = array<i64: 64, 1>}, {pipeline_mode = #tpu.pipeline_mode<synchronous>, transform_indices = @transform_3, window_bounds = array<i64: 32, 64>}, {pipeline_mode = #tpu.pipeline_mode<synchronous>, transform_indices = @transform_4, window_bounds = array<i64: 32, 1>}, {transform_indices = @transform_5, window_bounds = array<i64: 32, 128>}]} {
    %c0 = arith.constant 0 : index
    %c0_0 = arith.constant 0 : index
    %0 = vector.load %arg1[%c0, %c0_0] : memref<32x128xf32, #tpu.memory_space<vmem>>, vector<32x128xf32>
    %c0_1 = arith.constant 0 : index
    %c0_2 = arith.constant 0 : index
    %1 = vector.load %arg2[%c0_1, %c0_2] : memref<64x32xf32, #tpu.memory_space<vmem>>, vector<64x32xf32>
    %cst = arith.constant dense<0.000000e+00> : vector<64x128xf32>
    %2 = tpu.matmul %1, %0, %cst {dimension_numbers = #tpu.dot_dimension_numbers<[1], [0], [0], [1], [0, 0, 1, 1], [], []>} : vector<64x32xf32>, vector<32x128xf32>, vector<64x128xf32> -> vector<64x128xf32>
    %c0_3 = arith.constant 0 : index
    %c0_4 = arith.constant 0 : index
    %3 = vector.load %arg3[%c0_3, %c0_4] : memref<64x1xf32, #tpu.memory_space<vmem>>, vector<64x1xf32>
    %4 = vector.broadcast %3 : vector<64x1xf32> to vector<64x128xf32>
    %5 = arith.addf %2, %4 : vector<64x128xf32>
    %6 = math.tanh %5 : vector<64x128xf32>
    %c0_5 = arith.constant 0 : index
    %c0_6 = arith.constant 0 : index
    %7 = vector.load %arg4[%c0_5, %c0_6] : memref<32x64xf32, #tpu.memory_space<vmem>>, vector<32x64xf32>
    %cst_7 = arith.constant dense<0.000000e+00> : vector<32x128xf32>
    %8 = tpu.matmul %7, %6, %cst_7 {dimension_numbers = #tpu.dot_dimension_numbers<[1], [0], [0], [1], [0, 0, 1, 1], [], []>} : vector<32x64xf32>, vector<64x128xf32>, vector<32x128xf32> -> vector<32x128xf32>
    %c0_8 = arith.constant 0 : index
    %c0_9 = arith.constant 0 : index
    %9 = vector.load %arg5[%c0_8, %c0_9] : memref<32x1xf32, #tpu.memory_space<vmem>>, vector<32x1xf32>
    %10 = vector.broadcast %9 : vector<32x1xf32> to vector<32x128xf32>
    %11 = arith.addf %8, %10 : vector<32x128xf32>
    %12 = math.tanh %11 : vector<32x128xf32>
    %13 = arith.addf %12, %0 : vector<32x128xf32>
    %c0_10 = arith.constant 0 : index
    %c0_11 = arith.constant 0 : index
    %14 = vector.load %arg6[%c0_10, %c0_11] : memref<32x128xf32, #tpu.memory_space<vmem>>, vector<32x128xf32>
    tpu.vector_store %arg6[%c0_10, %c0_11], %13 {strides = array<i32>} : memref<32x128xf32, #tpu.memory_space<vmem>>, vector<32x128xf32>,
    return
  }
  func.func @transform_0(%arg0: i32) -> (i32, i32) {
    %c0_i32 = arith.constant 0 : i32
    %c0_i32_0 = arith.constant 0 : i32
    return %c0_i32, %arg0 : i32, i32
  }
  func.func @transform_1(%arg0: i32) -> (i32, i32) {
    %c0_i32 = arith.constant 0 : i32
    %c0_i32_0 = arith.constant 0 : i32
    %c0_i32_1 = arith.constant 0 : i32
    return %c0_i32, %c0_i32_0 : i32, i32
  }
  func.func @transform_2(%arg0: i32) -> (i32, i32) {
    %c0_i32 = arith.constant 0 : i32
    %c0_i32_0 = arith.constant 0 : i32
    %c0_i32_1 = arith.constant 0 : i32
    return %c0_i32, %c0_i32_0 : i32, i32
  }
  func.func @transform_3(%arg0: i32) -> (i32, i32) {
    %c0_i32 = arith.constant 0 : i32
    %c0_i32_0 = arith.constant 0 : i32
    %c0_i32_1 = arith.constant 0 : i32
    return %c0_i32, %c0_i32_0 : i32, i32
  }
  func.func @transform_4(%arg0: i32) -> (i32, i32) {
    %c0_i32 = arith.constant 0 : i32
    %c0_i32_0 = arith.constant 0 : i32
    %c0_i32_1 = arith.constant 0 : i32
    return %c0_i32, %c0_i32_0 : i32, i32
  }
  func.func @transform_5(%arg0: i32) -> (i32, i32) {
    %c0_i32 = arith.constant 0 : i32
    %c0_i32_0 = arith.constant 0 : i32
    return %c0_i32, %arg0 : i32, i32
  }
}

</mosaic_0001>

<llo_original>
// kernel: drm_block.1
$region0: #{drm_block.1}
  #allocation0 [shape = 'u32[]', space=smem, size = 0x4, offset = 0x4, fixed_abs, tag = 'smem constant byte address 0x4 - core index']
  #allocation1 [shape = 'u32[144,128]{1,0:T(1,128)}', space=vmem, size = 0x12000, scoped, tag = 'internal scratch']
  %s0 = inlined_call_operand.vmem [shape: f32[32,256], index: 0, kind: input, shape index: {}, may-alias: {0,5}]
  %s1 = inlined_call_operand.vmem [shape: f32[64,32], index: 1, kind: input, shape index: {}]
  %s2 = inlined_call_operand.vmem [shape: f32[64,1], index: 2, kind: input, shape index: {}]
  %s3 = inlined_call_operand.vmem [shape: f32[32,64], index: 3, kind: input, shape index: {}]
  %s4 = inlined_call_operand.vmem [shape: f32[32,1], index: 4, kind: input, shape index: {}]
  %s5 = inlined_call_operand.vmem [shape: f32[32,256], index: 5, kind: output, shape index: {}, may-alias: {0,5}]
  %s6 = sld [smem:[#allocation0]]
  $region125: #{drm_block.1} parent=0
    _
  %s8 = ssub.s32 1, %s6
  %s9 = scalar_select 0, %s8, %s6
  $region1: #{drm_block.1} parent=0
    #allocation2 [shape = 'u8[32768]{0}', space=vmem, size = 0x8000, scoped, tag = 'input window, operand 0']
    #allocation3 [shape = 'u8[32768]{0}', space=vmem, size = 0x8000, scoped, tag = 'output window, operand 0']
    loop: start=0, step=1, limit=4
    $region2: #{drm_block.1} parent=1 // loop_pre_header
      _
    $region3: #{drm_block.1} parent=1 // loop_header
      %s11 = sphi 0, %s15
      %p12 = scmp.ge.s32.totalorder %s11, 4
      %s21 = sphi 0, %s23
      %s24 = sphi 0, %s21
      %s25 = sphi 0, %s24
      %s41 = sphi 0, %s25
      %s45 = sphi 0, %s45
      %s47 = sphi 0, %s45
      %s48 = sphi 0, %s47
      %s62 = sphi 0, %s48
      %s66 = sphi 0, %s66
      %s68 = sphi 0, %s66
      %s69 = sphi 0, %s68
      %s83 = sphi 0, %s69
      %s87 = sphi 0, %s87
      %s89 = sphi 0, %s87
      %s90 = sphi 0, %s89
      %s104 = sphi 0, %s90
      %s108 = sphi 0, %s108
      %s110 = sphi 0, %s108
      %s111 = sphi 0, %s110
      %s125 = sphi 0, %s111
      %s131 = sphi 0, %s133
      %s134 = sphi 0, %s131
      %s135 = sphi 0, %s134
      %s151 = sphi 0, %s135
    $region4: #{drm_block.1} parent=1 // loop_header_branch
      %14 = sbr.rel (%p12) target = $region8
    $region5: #{drm_block.1} parent=1 // loop_body
      %s16 = ssub.s32 %s11, 1
      %s17 = ssub.s32 %s11, 2
      %s18 = sadd.s32 %s11, 1
      %s19 = ssub.s32 %s11, %s18
      %p20 = scmp.eq.s32.totalorder %s19, 0
      %s22 = sadd.s32 %s21, 1
      %s23 = scalar_select %p20, %s21, %s22
      %p26 = pneg %p20
      %p27 = scmp.eq.s32.totalorder %s11, 1
      %p28 = por %p26, %p27
      %p29 = scmp.ne.s32.totalorder %s21, %s24
      %p30 = scmp.eq.s32.totalorder %s11, 0
      %p31 = por %p29, %p30
      %p32 = scmp.ne.s32.totalorder %s21, %s24
      %p33 = scmp.eq.s32.totalorder %s16, 1
      %p34 = por %p32, %p33
      %p35 = scmp.ne.s32.totalorder %s24, %s25
      %p36 = scmp.eq.s32.totalorder %s16, 0
      %p37 = por %p35, %p36
      %p38 = scmp.ne.s32.totalorder %s24, %s25
      %p39 = scmp.eq.s32.totalorder %s17, 1
      %p40 = por %p38, %p39
      %p42 = scmp.ne.s32.totalorder %s25, %s41
      %p43 = scmp.eq.s32.totalorder %s17, 0
      %p44 = por %p42, %p43
      %s46 = sadd.s32 %s45, 1
      %p49 = scmp.eq.s32.totalorder %s11, 1
      %p50 = scmp.ne.s32.totalorder %s45, %s47
      %p51 = scmp.eq.s32.totalorder %s11, 0
      %p52 = por %p50, %p51
      %p53 = scmp.ne.s32.totalorder %s45, %s47
      %p54 = scmp.eq.s32.totalorder %s16, 1
      %p55 = por %p53, %p54
      %p56 = scmp.ne.s32.totalorder %s47, %s48
      %p57 = scmp.eq.s32.totalorder %s16, 0
      %p58 = por %p56, %p57
      %p59 = scmp.ne.s32.totalorder %s47, %s48
      %p60 = scmp.eq.s32.totalorder %s17, 1
      %p61 = por %p59, %p60
      %p63 = scmp.ne.s32.totalorder %s48, %s62
      %p64 = scmp.eq.s32.totalorder %s17, 0
      %p65 = por %p63, %p64
      %s67 = sadd.s32 %s66, 1
      %p70 = scmp.eq.s32.totalorder %s11, 1
      %p71 = scmp.ne.s32.totalorder %s66, %s68
      %p72 = scmp.eq.s32.totalorder %s11, 0
      %p73 = por %p71, %p72
      %p74 = scmp.ne.s32.totalorder %s66, %s68
      %p75 = scmp.eq.s32.totalorder %s16, 1
      %p76 = por %p74, %p75
      %p77 = scmp.ne.s32.totalorder %s68, %s69
      %p78 = scmp.eq.s32.totalorder %s16, 0
      %p79 = por %p77, %p78
      %p80 = scmp.ne.s32.totalorder %s68, %s69
      %p81 = scmp.eq.s32.totalorder %s17, 1
      %p82 = por %p80, %p81
      %p84 = scmp.ne.s32.totalorder %s69, %s83
      %p85 = scmp.eq.s32.totalorder %s17, 0
      %p86 = por %p84, %p85
      %s88 = sadd.s32 %s87, 1
      %p91 = scmp.eq.s32.totalorder %s11, 1
      %p92 = scmp.ne.s32.totalorder %s87, %s89
      %p93 = scmp.eq.s32.totalorder %s11, 0
      %p94 = por %p92, %p93
      %p95 = scmp.ne.s32.totalorder %s87, %s89
      %p96 = scmp.eq.s32.totalorder %s16, 1
      %p97 = por %p95, %p96
      %p98 = scmp.ne.s32.totalorder %s89, %s90
      %p99 = scmp.eq.s32.totalorder %s16, 0
      %p100 = por %p98, %p99
      %p101 = scmp.ne.s32.totalorder %s89, %s90
      %p102 = scmp.eq.s32.totalorder %s17, 1
      %p103 = por %p101, %p102
      %p105 = scmp.ne.s32.totalorder %s90, %s104
      %p106 = scmp.eq.s32.totalorder %s17, 0
      %p107 = por %p105, %p106
      %s109 = sadd.s32 %s108, 1
      %p112 = scmp.eq.s32.totalorder %s11, 1
      %p113 = scmp.ne.s32.totalorder %s108, %s110
      %p114 = scmp.eq.s32.totalorder %s11, 0
      %p115 = por %p113, %p114
      %p116 = scmp.ne.s32.totalorder %s108, %s110
      %p117 = scmp.eq.s32.totalorder %s16, 1
      %p118 = por %p116, %p117
      %p119 = scmp.ne.s32.totalorder %s110, %s111
      %p120 = scmp.eq.s32.totalorder %s16, 0
      %p121 = por %p119, %p120
      %p122 = scmp.ne.s32.totalorder %s110, %s111
      %p123 = scmp.eq.s32.totalorder %s17, 1
      %p124 = por %p122, %p123
      %p126 = scmp.ne.s32.totalorder %s111, %s125
      %p127 = scmp.eq.s32.totalorder %s17, 0
      %p128 = por %p126, %p127
      %s129 = ssub.s32 %s11, %s18
      %p130 = scmp.eq.s32.totalorder %s129, 0
      %s132 = sadd.s32 %s131, 1
      %s133 = scalar_select %p130, %s131, %s132
      %p136 = pneg %p130
      %p137 = scmp.eq.s32.totalorder %s11, 1
      %p138 = por %p136, %p137
      %p139 = scmp.ne.s32.totalorder %s131, %s134
      %p140 = scmp.eq.s32.totalorder %s11, 0
      %p141 = por %p139, %p140
      %p142 = scmp.ne.s32.totalorder %s131, %s134
      %p143 = scmp.eq.s32.totalorder %s16, 1
      %p144 = por %p142, %p143
      %p145 = scmp.ne.s32.totalorder %s134, %s135
      %p146 = scmp.eq.s32.totalorder %s16, 0
      %p147 = por %p145, %p146
      %p148 = scmp.ne.s32.totalorder %s134, %s135
      %p149 = scmp.eq.s32.totalorder %s17, 1
      %p150 = por %p148, %p149
      %p152 = scmp.ne.s32.totalorder %s135, %s151
      %p153 = scmp.eq.s32.totalorder %s17, 0
      %p154 = por %p152, %p153
      %p155 = scmp.le.s32.totalorder 1, %s11
      %p156 = scmp.lt.s32.totalorder %s11, 3
      %p157 = pnand %p155, %p156
      %p158 = pneg %p157
      // Predicated region
      $region9: #{drm_block.1} parent=5 // pred_check
        _
      $region10: #{drm_block.1} parent=5 // pred_check_branch
        %160 = sbr.rel (%p157) target = $region12
      $region11: #{drm_block.1} parent=5 // pred_region
        %s161 = ssub.s32 %s11, 1
        // Predicated region
        $region13: #{drm_block.1} parent=11 // pred_check
          %p162 = pneg %p58
        $region14: #{drm_block.1} parent=11 // pred_check_branch
          %164 = sbr.rel (%p162) target = $region16
        $region15: #{drm_block.1} parent=11 // pred_region
          _
        $region16: #{drm_block.1} parent=11 // pred_fallthru
          _
        // Predicated region
        $region17: #{drm_block.1} parent=11 // pred_check
          %p165 = pneg %p79
        $region18: #{drm_block.1} parent=11 // pred_check_branch
          %167 = sbr.rel (%p165) target = $region20
        $region19: #{drm_block.1} parent=11 // pred_region
          _
        $region20: #{drm_block.1} parent=11 // pred_fallthru
          _
        // Predicated region
        $region21: #{drm_block.1} parent=11 // pred_check
          %p168 = pneg %p100
        $region22: #{drm_block.1} parent=11 // pred_check_branch
          %170 = sbr.rel (%p168) target = $region24
        $region23: #{drm_block.1} parent=11 // pred_region
          _
        $region24: #{drm_block.1} parent=11 // pred_fallthru
          _
        // Predicated region
        $region25: #{drm_block.1} parent=11 // pred_check
          %p171 = pneg %p121
        $region26: #{drm_block.1} parent=11 // pred_check_branch
          %173 = sbr.rel (%p171) target = $region28
        $region27: #{drm_block.1} parent=11 // pred_region
          _
        $region28: #{drm_block.1} parent=11 // pred_fallthru
          _
      $region12: #{drm_block.1} parent=5 // pred_fallthru
        _
      %p174 = scmp.lt.s32.totalorder %s11, 2
      // Predicated region
      $region29: #{drm_block.1} parent=5 // pred_check
        %p175 = pneg %p174
      $region30: #{drm_block.1} parent=5 // pred_check_branch
        %177 = sbr.rel (%p175) target = $region32
      $region31: #{drm_block.1} parent=5 // pred_region
        // Predicated region
        $region33: #{drm_block.1} parent=31 // pred_check
          %p178 = pneg %p31
        $region34: #{drm_block.1} parent=31 // pred_check_branch
          %180 = sbr.rel (%p178) target = $region36
        $region35: #{drm_block.1} parent=31 // pred_region
          %s181 = sand.u32 %s21, 1
          %s182 = sand.u32 %s21, 1
          %s183 = smul.addr %s182, 32
          %s184 = scalar_lea.vmem [#allocation2], %s183
          %s185 = smul.addr %s11, 8
          %s186 = scalar_lea.vmem %s0, %s185
          // Predicated region
          $region37: #{drm_block.1} parent=35 // pred_check
            _
          $region38: #{drm_block.1} parent=35 // pred_check_branch
            %188 = sbr.rel (0) target = $region40
          $region39: #{drm_block.1} parent=35 // pred_region
            // Predicated region
            $region41: #{drm_block.1} parent=39 // pred_check
              _
            $region42: #{drm_block.1} parent=39 // pred_check_branch
              %190 = sbr.rel (0) target = $region44
            $region43: #{drm_block.1} parent=39 // pred_region
              // Predicated region
              $region56: #{drm_block.1} parent=43 // pred_check
                _
              $region57: #{drm_block.1} parent=43 // pred_check_branch
                %212 = sbr.rel (0) target = $region59
              $region58: #{drm_block.1} parent=43 // pred_region
                loop: start=0, step=1, limit=1
                $region60: #{drm_block.1} parent=58 // loop_pre_header
                  _
                $region61: #{drm_block.1} parent=58 // loop_header
                  %s214 = sphi 0, %s218
                  %p215 = scmp.ge.s32.totalorder %s214, 1
                  %s219 = sphi %s186, %s186
                  %s220 = sphi %s184, %s184
                $region62: #{drm_block.1} parent=58 // loop_header_branch
                  %217 = sbr.rel (%p215) target = $region66
                $region63: #{drm_block.1} parent=58 // loop_body
                  %v221 = vld [vmem:[%s219] sm:$0xff]
                  %222 = vst [vmem:[%s220] sm:$0xff] %v221
                  %v223 = vld [vmem:[%s219 + $0x10] sm:$0xff]
                  %224 = vst [vmem:[%s220 + $0x8] sm:$0xff] %v223
                  %v225 = vld [vmem:[%s219 + $0x20] sm:$0xff]
                  %226 = vst [vmem:[%s220 + $0x10] sm:$0xff] %v225
                  %v227 = vld [vmem:[%s219 + $0x30] sm:$0xff]
                  %228 = vst [vmem:[%s220 + $0x18] sm:$0xff] %v227
                $region64: #{drm_block.1} parent=58 // loop_footer
                  %s218 = sadd.s32 1, %s214
                $region65: #{drm_block.1} parent=58 // loop_footer_branch
                  %213 = sbr.rel target = $region61
                $region66: #{drm_block.1} parent=58 // loop_exit
                  _
              $region59: #{drm_block.1} parent=43 // pred_fallthru
                _
              // Predicated region
              $region67: #{drm_block.1} parent=43 // pred_check
                _
              $region68: #{drm_block.1} parent=43 // pred_check_branch
                %230 = sbr.rel target = $region70
              $region69: #{drm_block.1} parent=43 // pred_region
                _
              $region70: #{drm_block.1} parent=43 // pred_fallthru
                _
            $region44: #{drm_block.1} parent=39 // pred_fallthru
              _
            // Predicated region
            $region45: #{drm_block.1} parent=39 // pred_check
              _
            $region46: #{drm_block.1} parent=39 // pred_check_branch
              %192 = sbr.rel target = $region48
            $region47: #{drm_block.1} parent=39 // pred_region
              %s194 = ssub.s32 256, 1
              loop: start=0, step=1, limit=1
              $region49: #{drm_block.1} parent=47 // loop_pre_header
                _
              $region50: #{drm_block.1} parent=47 // loop_header
                %s196 = sphi 0, %s200
                %p197 = scmp.ge.s32.totalorder %s196, 1
                %s201 = sphi %s186, %s186
                %s202 = sphi %s184, %s184
              $region51: #{drm_block.1} parent=47 // loop_header_branch
                %199 = sbr.rel (%p197) target = $region55
              $region52: #{drm_block.1} parent=47 // loop_body
                %v203 = vld [vmem:[%s201] sm:%s194]
                %204 = vst [vmem:[%s202] sm:%s194] %v203
                %v205 = vld [vmem:[%s201 + $0x10] sm:%s194]
                %206 = vst [vmem:[%s202 + $0x8] sm:%s194] %v205
                %v207 = vld [vmem:[%s201 + $0x20] sm:%s194]
                %208 = vst [vmem:[%s202 + $0x10] sm:%s194] %v207
                %v209 = vld [vmem:[%s201 + $0x30] sm:%s194]
                %210 = vst [vmem:[%s202 + $0x18] sm:%s194] %v209
              $region53: #{drm_block.1} parent=47 // loop_footer
                %s200 = sadd.s32 1, %s196
              $region54: #{drm_block.1} parent=47 // loop_footer_branch
                %195 = sbr.rel target = $region50
              $region55: #{drm_block.1} parent=47 // loop_exit
                _
            $region48: #{drm_block.1} parent=39 // pred_fallthru
              _
          $region40: #{drm_block.1} parent=35 // pred_fallthru
            _
          %231 = vnop
        $region36: #{drm_block.1} parent=31 // pred_fallthru
          _
      $region32: #{drm_block.1} parent=5 // pred_fallthru
        _
      %p232 = scmp.le.s32.totalorder 1, %s11
      %p233 = scmp.lt.s32.totalorder %s11, 3
      %p234 = pnand %p232, %p233
      %p235 = pneg %p234
      // Predicated region
      $region71: #{drm_block.1} parent=5 // pred_check
        _
      $region72: #{drm_block.1} parent=5 // pred_check_branch
        %237 = sbr.rel (%p234) target = $region74
      $region73: #{drm_block.1} parent=5 // pred_region
        %s238 = ssub.s32 %s11, 1
        %s239 = sand.u32 %s24, 1
        %s240 = sand.u32 %s24, 1
        %s241 = smul.addr %s240, 32
        %s242 = scalar_lea.vmem [#allocation2], %s241
        // Predicated region
        $region75: #{drm_block.1} parent=73 // pred_check
          %p243 = pneg %p37
        $region76: #{drm_block.1} parent=73 // pred_check_branch
          %245 = sbr.rel (%p243) target = $region78
        $region77: #{drm_block.1} parent=73 // pred_region
          _
        $region78: #{drm_block.1} parent=73 // pred_fallthru
          _
        %s246 = sand.u32 %s24, 1
        %s247 = sand.u32 %s24, 1
        %s248 = smul.addr %s247, 32
        %s249 = scalar_lea.vmem [#allocation2], %s248
        %p250 = pneg %p37
        %p251 = pneg %p34
        %p252 = pneg %p58
        %p253 = pneg %p55
        %p254 = pneg %p79
        %p255 = pneg %p76
        %p256 = pneg %p100
        %p257 = pneg %p97
        %p258 = pneg %p121
        %p259 = pneg %p118
        %p260 = pneg %p147
        %p261 = pneg %p144
        %s262 = sand.u32 %s134, 1
        %s263 = sand.u32 %s134, 1
        %s264 = smul.addr %s263, 32
        %s265 = scalar_lea.vmem [#allocation3], %s264
        %v266 = vld [vmem:[%s242] sm:$0xff]
        %v267 = vld [vmem:[%s242 + $0x8] sm:$0xff]
        %v268 = vld [vmem:[%s242 + $0x10] sm:$0xff]
        %v269 = vld [vmem:[%s242 + $0x18] sm:$0xff]
        %v270 = vld [vmem:[%s1] sm:$0xff]
        %v271 = vld [vmem:[%s1 + $0x8] sm:$0xff]
        %v272 = vld [vmem:[%s1 + $0x10] sm:$0xff]
        %v273 = vld [vmem:[%s1 + $0x18] sm:$0xff]
        %v274 = vld [vmem:[%s1 + $0x20] sm:$0xff]
        %v275 = vld [vmem:[%s1 + $0x28] sm:$0xff]
        %v276 = vld [vmem:[%s1 + $0x30] sm:$0xff]
        %v277 = vld [vmem:[%s1 + $0x38] sm:$0xff]
        %v278 = vld [vmem:[%s2] sm:$0xff]
        %v279 = vld [vmem:[%s2 + $0x8] sm:$0xff]
        %v280 = vld [vmem:[%s2 + $0x10] sm:$0xff]
        %v281 = vld [vmem:[%s2 + $0x18] sm:$0xff]
        %v282 = vld [vmem:[%s2 + $0x20] sm:$0xff]
        %v283 = vld [vmem:[%s2 + $0x28] sm:$0xff]
        %v284 = vld [vmem:[%s2 + $0x30] sm:$0xff]
        %v285 = vld [vmem:[%s2 + $0x38] sm:$0xff]
        %287 = vset.pattern.permute.xlu0 0
        %288 = vperm.xlu0 %287, %v278
        %v289 = vpop.permute.xlu0 %288
        %292 = vset.pattern.permute.xlu0 0
        %293 = vperm.xlu0 %292, %v279
        %v294 = vpop.permute.xlu0 %293
        %297 = vset.pattern.permute.xlu0 0
        %298 = vperm.xlu0 %297, %v280
        %v299 = vpop.permute.xlu0 %298
        %302 = vset.pattern.permute.xlu0 0
        %303 = vperm.xlu0 %302, %v281
        %v304 = vpop.permute.xlu0 %303
        %307 = vset.pattern.permute.xlu0 0
        %308 = vperm.xlu0 %307, %v282
        %v309 = vpop.permute.xlu0 %308
        %312 = vset.pattern.permute.xlu0 0
        %313 = vperm.xlu0 %312, %v283
        %v314 = vpop.permute.xlu0 %313
        %317 = vset.pattern.permute.xlu0 0
        %318 = vperm.xlu0 %317, %v284
        %v319 = vpop.permute.xlu0 %318
        %322 = vset.pattern.permute.xlu0 0
        %323 = vperm.xlu0 %322, %v285
        %v324 = vpop.permute.xlu0 %323
        %vm326 = vcmask 261120
        %v328 = vsel %vm326, %v270, 0
        %v331 = vsel %vm326, %v271, 0
        %v334 = vsel %vm326, %v272, 0
        %v337 = vsel %vm326, %v273, 0
        %v340 = vsel %vm326, %v274, 0
        %v343 = vsel %vm326, %v275, 0
        %v346 = vsel %vm326, %v276, 0
        %v349 = vsel %vm326, %v277, 0
        %351 = vmatprep.subr.mxu0 0.0
        %352 = vmatpush1.msra.mxu0 0.0
        %353 = vmatprep.subr.mxu0 0.0
        %354 = vmatpush1.msra.mxu0 0.0
        %355 = vmatprep.subr.mxu0 0.0
        %356 = vmatpush1.msra.mxu0 0.0
        %357 = vmatprep.subr.mxu0 0.0
        %358 = vmatpush1.msra.mxu0 0.0
        %359 = vmatprep.subr.mxu0 0.0
        %360 = vmatpush1.msra.mxu0 0.0
        %361 = vmatprep.subr.mxu0 0.0
        %362 = vmatpush1.msra.mxu0 0.0
        %363 = vmatprep.subr.mxu0 0.0
        %364 = vmatpush1.msra.mxu0 0.0
        %365 = vmatprep.subr.mxu0 0.0
        %366 = vmatpush1.msra.mxu0 0.0
        %367 = vmatprep.subr.mxu0 0.0
        %368 = vmatpush1.msra.mxu0 0.0
        %369 = vmatprep.subr.mxu0 0.0
        %370 = vmatpush1.msra.mxu0 0.0
        %371 = vmatprep.subr.mxu0 0.0
        %372 = vmatpush1.msra.mxu0 0.0
        %373 = vmatprep.subr.mxu0 0.0
        %374 = vmatpush1.msra.mxu0 0.0
        %375 = vmatprep.subr.mxu0 0.0
        %376 = vmatpush1.msra.mxu0 %v269
        %377 = vmatprep.subr.mxu0 0.0
        %378 = vmatpush1.msra.mxu0 %v268
        %379 = vmatprep.subr.mxu0 0.0
        %380 = vmatpush1.msra.mxu0 %v267
        %381 = vmatprep.subr.mxu0 0.0
        %382 = vmatpush1.msra.mxu0 %v266
        %383 = vmatprep.subr.mxu0 0.0
        %384 = vmatpush2.msra.mxu0 0.0
        %385 = vmatprep.subr.mxu0 0.0
        %386 = vmatpush2.msra.mxu0 0.0
        %387 = vmatprep.subr.mxu0 0.0
        %388 = vmatpush2.msra.mxu0 0.0
        %389 = vmatprep.subr.mxu0 0.0
        %390 = vmatpush2.msra.mxu0 0.0
        %391 = vmatprep.subr.mxu0 0.0
        %392 = vmatpush2.msra.mxu0 0.0
        %393 = vmatprep.subr.mxu0 0.0
        %394 = vmatpush2.msra.mxu0 0.0
        %395 = vmatprep.subr.mxu0 0.0
        %396 = vmatpush2.msra.mxu0 0.0
        %397 = vmatprep.subr.mxu0 0.0
        %398 = vmatpush2.msra.mxu0 0.0
        %399 = vmatprep.subr.mxu0 0.0
        %400 = vmatpush2.msra.mxu0 0.0
        %401 = vmatprep.subr.mxu0 0.0
        %402 = vmatpush2.msra.mxu0 0.0
        %403 = vmatprep.subr.mxu0 0.0
        %404 = vmatpush2.msra.mxu0 0.0
        %405 = vmatprep.subr.mxu0 0.0
        %406 = vmatpush2.msra.mxu0 0.0
        %407 = vmatprep.subr.mxu0 0.0
        %408 = vmatpush2.msra.mxu0 0.0
        %409 = vmatprep.subr.mxu0 0.0
        %410 = vmatpush2.msra.mxu0 0.0
        %411 = vmatprep.subr.mxu0 0.0
        %412 = vmatpush2.msra.mxu0 0.0
        %413 = vmatprep.subr.mxu0 0.0
        %414 = vmatpush2.msra.mxu0 0.0
        %415 = vmatprep.mubr.f32.mxu0 0.0
        %416 = vmatmul.mubr.f32.gmra.mxu0 %v328
        %v417 = vpop.f32.mrf.mxu0
        %v418 = vadd.f32 %v289, %v417
        %v419 = vpop.f32.mrf.mxu0
        %420 = vmatprep.mubr.f32.mxu0 0.0
        %421 = vmatmul.mubr.f32.gmra.mxu0 %v331
        %v422 = vpop.f32.mrf.mxu0
        %v423 = vadd.f32 %v294, %v422
        %v424 = vpop.f32.mrf.mxu0
        %425 = vmatprep.mubr.f32.mxu0 0.0
        %426 = vmatmul.mubr.f32.gmra.mxu0 %v334
        %v427 = vpop.f32.mrf.mxu0
        %v428 = vadd.f32 %v299, %v427
        %v429 = vpop.f32.mrf.mxu0
        %430 = vmatprep.mubr.f32.mxu0 0.0
        %431 = vmatmul.mubr.f32.gmra.mxu0 %v337
        %v432 = vpop.f32.mrf.mxu0
        %v433 = vadd.f32 %v304, %v432
        %v434 = vpop.f32.mrf.mxu0
        %435 = vmatprep.mubr.f32.mxu0 0.0
        %436 = vmatmul.mubr.f32.gmra.mxu0 %v340
        %v437 = vpop.f32.mrf.mxu0
        %v438 = vadd.f32 %v309, %v437
        %v439 = vpop.f32.mrf.mxu0
        %440 = vmatprep.mubr.f32.mxu0 0.0
        %441 = vmatmul.mubr.f32.gmra.mxu0 %v343
        %v442 = vpop.f32.mrf.mxu0
        %v443 = vadd.f32 %v314, %v442
        %v444 = vpop.f32.mrf.mxu0
        %445 = vmatprep.mubr.f32.mxu0 0.0
        %446 = vmatmul.mubr.f32.gmra.mxu0 %v346
        %v447 = vpop.f32.mrf.mxu0
        %v448 = vadd.f32 %v319, %v447
        %v449 = vpop.f32.mrf.mxu0
        %450 = vmatprep.mubr.f32.mxu0 0.0
        %451 = vmatmul.mubr.f32.gmra.mxu0 %v349
        %v452 = vpop.f32.mrf.mxu0
        %v453 = vadd.f32 %v324, %v452
        %v454 = vpop.f32.mrf.mxu0
        %455 = vdwg.mxu0
        %v456 = vtanh.pop %v418
        %v457 = vtanh.pop %v423
        %v458 = vtanh.pop %v428
        %v459 = vtanh.pop %v433
        %v460 = vtanh.pop %v438
        %v461 = vtanh.pop %v443
        %v462 = vtanh.pop %v448
        %v463 = vtanh.pop %v453
        %v464 = vld [vmem:[%s3] sm:$0xff]
        %v465 = vld [vmem:[%s3 + $0x8] sm:$0xff]
        %v466 = vld [vmem:[%s3 + $0x10] sm:$0xff]
        %v467 = vld [vmem:[%s3 + $0x18] sm:$0xff]
        %v468 = vld [vmem:[%s4] sm:$0xff]
        %v469 = vld [vmem:[%s4 + $0x8] sm:$0xff]
        %v470 = vld [vmem:[%s4 + $0x10] sm:$0xff]
        %v471 = vld [vmem:[%s4 + $0x18] sm:$0xff]
        %473 = vset.pattern.permute.xlu0 0
        %474 = vperm.xlu0 %473, %v468
        %v475 = vpop.permute.xlu0 %474
        %478 = vset.pattern.permute.xlu0 0
        %479 = vperm.xlu0 %478, %v469
        %v480 = vpop.permute.xlu0 %479
        %483 = vset.pattern.permute.xlu0 0
        %484 = vperm.xlu0 %483, %v470
        %v485 = vpop.permute.xlu0 %484
        %488 = vset.pattern.permute.xlu0 0
        %489 = vperm.xlu0 %488, %v471
        %v490 = vpop.permute.xlu0 %489
        %vm492 = vcmask 523264
        %v494 = vsel %vm492, %v464, 0
        %v497 = vsel %vm492, %v465, 0
        %v500 = vsel %vm492, %v466, 0
        %v503 = vsel %vm492, %v467, 0
        %505 = vmatprep.subr.mxu0 0.0
        %506 = vmatpush1.msra.mxu0 0.0
        %507 = vmatprep.subr.mxu0 0.0
        %508 = vmatpush1.msra.mxu0 0.0
        %509 = vmatprep.subr.mxu0 0.0
        %510 = vmatpush1.msra.mxu0 0.0
        %511 = vmatprep.subr.mxu0 0.0
        %512 = vmatpush1.msra.mxu0 0.0
        %513 = vmatprep.subr.mxu0 0.0
        %514 = vmatpush1.msra.mxu0 0.0
        %515 = vmatprep.subr.mxu0 0.0
        %516 = vmatpush1.msra.mxu0 0.0
        %517 = vmatprep.subr.mxu0 0.0
        %518 = vmatpush1.msra.mxu0 0.0
        %519 = vmatprep.subr.mxu0 0.0
        %520 = vmatpush1.msra.mxu0 0.0
        %521 = vmatprep.subr.mxu0 0.0
        %522 = vmatpush1.msra.mxu0 %v463
        %523 = vmatprep.subr.mxu0 0.0
        %524 = vmatpush1.msra.mxu0 %v462
        %525 = vmatprep.subr.mxu0 0.0
        %526 = vmatpush1.msra.mxu0 %v461
        %527 = vmatprep.subr.mxu0 0.0
        %528 = vmatpush1.msra.mxu0 %v460
        %529 = vmatprep.subr.mxu0 0.0
        %530 = vmatpush1.msra.mxu0 %v459
        %531 = vmatprep.subr.mxu0 0.0
        %532 = vmatpush1.msra.mxu0 %v458
        %533 = vmatprep.subr.mxu0 0.0
        %534 = vmatpush1.msra.mxu0 %v457
        %535 = vmatprep.subr.mxu0 0.0
        %536 = vmatpush1.msra.mxu0 %v456
        %537 = vmatprep.subr.mxu0 0.0
        %538 = vmatpush2.msra.mxu0 0.0
        %539 = vmatprep.subr.mxu0 0.0
        %540 = vmatpush2.msra.mxu0 0.0
        %541 = vmatprep.subr.mxu0 0.0
        %542 = vmatpush2.msra.mxu0 0.0
        %543 = vmatprep.subr.mxu0 0.0
        %544 = vmatpush2.msra.mxu0 0.0
        %545 = vmatprep.subr.mxu0 0.0
        %546 = vmatpush2.msra.mxu0 0.0
        %547 = vmatprep.subr.mxu0 0.0
        %548 = vmatpush2.msra.mxu0 0.0
        %549 = vmatprep.subr.mxu0 0.0
        %550 = vmatpush2.msra.mxu0 0.0
        %551 = vmatprep.subr.mxu0 0.0
        %552 = vmatpush2.msra.mxu0 0.0
        %553 = vmatprep.subr.mxu0 0.0
        %554 = vmatpush2.msra.mxu0 0.0
        %555 = vmatprep.subr.mxu0 0.0
        %556 = vmatpush2.msra.mxu0 0.0
        %557 = vmatprep.subr.mxu0 0.0
        %558 = vmatpush2.msra.mxu0 0.0
        %559 = vmatprep.subr.mxu0 0.0
        %560 = vmatpush2.msra.mxu0 0.0
        %561 = vmatprep.subr.mxu0 0.0
        %562 = vmatpush2.msra.mxu0 0.0
        %563 = vmatprep.subr.mxu0 0.0
        %564 = vmatpush2.msra.mxu0 0.0
        %565 = vmatprep.subr.mxu0 0.0
        %566 = vmatpush2.msra.mxu0 0.0
        %567 = vmatprep.subr.mxu0 0.0
        %568 = vmatpush2.msra.mxu0 0.0
        %569 = vmatprep.mubr.f32.mxu0 0.0
        %570 = vmatmul.mubr.f32.gmra.mxu0 %v494
        %v571 = vpop.f32.mrf.mxu0
        %v572 = vadd.f32 %v475, %v571
        %v573 = vpop.f32.mrf.mxu0
        %574 = vmatprep.mubr.f32.mxu0 0.0
        %575 = vmatmul.mubr.f32.gmra.mxu0 %v497
        %v576 = vpop.f32.mrf.mxu0
        %v577 = vadd.f32 %v480, %v576
        %v578 = vpop.f32.mrf.mxu0
        %579 = vmatprep.mubr.f32.mxu0 0.0
        %580 = vmatmul.mubr.f32.gmra.mxu0 %v500
        %v581 = vpop.f32.mrf.mxu0
        %v582 = vadd.f32 %v485, %v581
        %v583 = vpop.f32.mrf.mxu0
        %584 = vmatprep.mubr.f32.mxu0 0.0
        %585 = vmatmul.mubr.f32.gmra.mxu0 %v503
        %v586 = vpop.f32.mrf.mxu0
        %v587 = vadd.f32 %v490, %v586
        %v588 = vpop.f32.mrf.mxu0
        %589 = vdwg.mxu0
        %v590 = vtanh.pop %v572
        %v591 = vtanh.pop %v577
        %v592 = vtanh.pop %v582
        %v593 = vtanh.pop %v587
        %v594 = vadd.f32 %v590, %v266
        %v595 = vadd.f32 %v591, %v267
        %v596 = vadd.f32 %v592, %v268
        %v597 = vadd.f32 %v593, %v269
        %598 = vst [vmem:[%s265] sm:$0xff] %v594
        %599 = vst [vmem:[%s265 + $0x8] sm:$0xff] %v595
        %600 = vst [vmem:[%s265 + $0x10] sm:$0xff] %v596
        %601 = vst [vmem:[%s265 + $0x18] sm:$0xff] %v597
        %s602 = sand.u32 %s134, 1
        %s603 = sand.u32 %s134, 1
        %s604 = smul.addr %s603, 32
        %s605 = scalar_lea.vmem [#allocation3], %s604
        // Predicated region
        $region79: #{drm_block.1} parent=73 // pred_check
          %p606 = pneg %p144
        $region80: #{drm_block.1} parent=73 // pred_check_branch
          %608 = sbr.rel (%p606) target = $region82
        $region81: #{drm_block.1} parent=73 // pred_region
          %s609 = smul.addr %s16, 8
          %s610 = scalar_lea.vmem %s5, %s609
          // Predicated region
          $region83: #{drm_block.1} parent=81 // pred_check
            _
          $region84: #{drm_block.1} parent=81 // pred_check_branch
            %612 = sbr.rel (0) target = $region86
          $region85: #{drm_block.1} parent=81 // pred_region
            // Predicated region
            $region87: #{drm_block.1} parent=85 // pred_check
              _
            $region88: #{drm_block.1} parent=85 // pred_check_branch
              %614 = sbr.rel (0) target = $region90
            $region89: #{drm_block.1} parent=85 // pred_region
              // Predicated region
              $region102: #{drm_block.1} parent=89 // pred_check
                _
              $region103: #{drm_block.1} parent=89 // pred_check_branch
                %636 = sbr.rel (0) target = $region105
              $region104: #{drm_block.1} parent=89 // pred_region
                loop: start=0, step=1, limit=1
                $region106: #{drm_block.1} parent=104 // loop_pre_header
                  _
                $region107: #{drm_block.1} parent=104 // loop_header
                  %s638 = sphi 0, %s642
                  %p639 = scmp.ge.s32.totalorder %s638, 1
                  %s643 = sphi %s605, %s605
                  %s644 = sphi %s610, %s610
                $region108: #{drm_block.1} parent=104 // loop_header_branch
                  %641 = sbr.rel (%p639) target = $region112
                $region109: #{drm_block.1} parent=104 // loop_body
                  %v645 = vld [vmem:[%s643] sm:$0xff]
                  %646 = vst [vmem:[%s644] sm:$0xff] %v645
                  %v647 = vld [vmem:[%s643 + $0x8] sm:$0xff]
                  %648 = vst [vmem:[%s644 + $0x10] sm:$0xff] %v647
                  %v649 = vld [vmem:[%s643 + $0x10] sm:$0xff]
                  %650 = vst [vmem:[%s644 + $0x20] sm:$0xff] %v649
                  %v651 = vld [vmem:[%s643 + $0x18] sm:$0xff]
                  %652 = vst [vmem:[%s644 + $0x30] sm:$0xff] %v651
                $region110: #{drm_block.1} parent=104 // loop_footer
                  %s642 = sadd.s32 1, %s638
                $region111: #{drm_block.1} parent=104 // loop_footer_branch
                  %637 = sbr.rel target = $region107
                $region112: #{drm_block.1} parent=104 // loop_exit
                  _
              $region105: #{drm_block.1} parent=89 // pred_fallthru
                _
              // Predicated region
              $region113: #{drm_block.1} parent=89 // pred_check
                _
              $region114: #{drm_block.1} parent=89 // pred_check_branch
                %654 = sbr.rel target = $region116
              $region115: #{drm_block.1} parent=89 // pred_region
                _
              $region116: #{drm_block.1} parent=89 // pred_fallthru
                _
            $region90: #{drm_block.1} parent=85 // pred_fallthru
              _
            // Predicated region
            $region91: #{drm_block.1} parent=85 // pred_check
              _
            $region92: #{drm_block.1} parent=85 // pred_check_branch
              %616 = sbr.rel target = $region94
            $region93: #{drm_block.1} parent=85 // pred_region
              %s618 = ssub.s32 256, 1
              loop: start=0, step=1, limit=1
              $region95: #{drm_block.1} parent=93 // loop_pre_header
                _
              $region96: #{drm_block.1} parent=93 // loop_header
                %s620 = sphi 0, %s624
                %p621 = scmp.ge.s32.totalorder %s620, 1
                %s625 = sphi %s605, %s605
                %s626 = sphi %s610, %s610
              $region97: #{drm_block.1} parent=93 // loop_header_branch
                %623 = sbr.rel (%p621) target = $region101
              $region98: #{drm_block.1} parent=93 // loop_body
                %v627 = vld [vmem:[%s625] sm:%s618]
                %628 = vst [vmem:[%s626] sm:%s618] %v627
                %v629 = vld [vmem:[%s625 + $0x8] sm:%s618]
                %630 = vst [vmem:[%s626 + $0x10] sm:%s618] %v629
                %v631 = vld [vmem:[%s625 + $0x10] sm:%s618]
                %632 = vst [vmem:[%s626 + $0x20] sm:%s618] %v631
                %v633 = vld [vmem:[%s625 + $0x18] sm:%s618]
                %634 = vst [vmem:[%s626 + $0x30] sm:%s618] %v633
              $region99: #{drm_block.1} parent=93 // loop_footer
                %s624 = sadd.s32 1, %s620
              $region100: #{drm_block.1} parent=93 // loop_footer_branch
                %619 = sbr.rel target = $region96
              $region101: #{drm_block.1} parent=93 // loop_exit
                _
            $region94: #{drm_block.1} parent=85 // pred_fallthru
              _
          $region86: #{drm_block.1} parent=81 // pred_fallthru
            _
          %655 = vnop
        $region82: #{drm_block.1} parent=73 // pred_fallthru
          _
      $region74: #{drm_block.1} parent=5 // pred_fallthru
        _
      %p656 = scmp.le.s32.totalorder 2, %s11
      // Predicated region
      $region117: #{drm_block.1} parent=5 // pred_check
        %p657 = pneg %p656
      $region118: #{drm_block.1} parent=5 // pred_check_branch
        %659 = sbr.rel (%p657) target = $region120
      $region119: #{drm_block.1} parent=5 // pred_region
        %s660 = ssub.s32 %s11, 2
        // Predicated region
        $region121: #{drm_block.1} parent=119 // pred_check
          %p661 = pneg %p150
        $region122: #{drm_block.1} parent=119 // pred_check_branch
          %663 = sbr.rel (%p661) target = $region124
        $region123: #{drm_block.1} parent=119 // pred_region
          %s664 = sand.u32 %s135, 1
          %s665 = sand.u32 %s135, 1
          %s666 = smul.addr %s665, 32
          %s667 = scalar_lea.vmem [#allocation3], %s666
        $region124: #{drm_block.1} parent=119 // pred_fallthru
          _
      $region120: #{drm_block.1} parent=5 // pred_fallthru
        _
    $region6: #{drm_block.1} parent=1 // loop_footer
      %s15 = sadd.s32 1, %s11
    $region7: #{drm_block.1} parent=1 // loop_footer_branch
      %10 = sbr.rel target = $region3
    $region8: #{drm_block.1} parent=1 // loop_exit
      _

</llo_original>
